<compile_context>
chip_gen: v5e
topology: v5e:2x2
jax: 0.10.0
libtpu: 0.0.40
codegen_flags: <defaults>
</compile_context>

<pallas_src>
import functools

import jax
import jax.numpy as jnp
from jax import lax
from jax.experimental import pallas as pl
from jax.experimental.pallas import tpu as pltpu

LOG_SIG_MAX = 2.0
LOG_SIG_MIN = -20.0

_LANE = 128
_SUBLANE = 8


def _round_up(x, m):
    return ((x + m - 1) // m) * m


def _cdiv(a, b):
    return -(-a // b)


# --------------------------------------------------------------------------
# Kernel
# --------------------------------------------------------------------------
def _policy_kernel(num_hidden_layers, num_actions, compute_dtype, *refs):
    # refs: x, w_in, b_in, [w_hid, b_hid], w_head, b_head, out
    it = iter(refs)
    x_ref = next(it)
    w_in_ref = next(it)
    b_in_ref = next(it)
    if num_hidden_layers > 0:
        w_hid_ref = next(it)   # [L, Hp, Hp]
        b_hid_ref = next(it)   # [L, 1, Hp]  (f32)
    w_head_ref = next(it)      # [Hp, Ap2]  (mean || log_std, padded)
    b_head_ref = next(it)      # [1, Ap2]   (f32)
    out_ref = next(it)         # [TB, Ap2]  lane-dense fused output

    cdt = compute_dtype  # bf16 fast path or f32 parity path; accum always f32

    # input layer + ReLU
    x = jnp.dot(x_ref[...].astype(cdt), w_in_ref[...],
                preferred_element_type=jnp.float32)
    x = jnp.maximum(x + b_in_ref[...], 0.0)

    # hidden layers + ReLU
    if num_hidden_layers > 0:
        def layer(l, x):
            h = jnp.dot(x.astype(cdt), w_hid_ref[l],
                        preferred_element_type=jnp.float32)
            return jnp.maximum(h + b_hid_ref[l], 0.0)

        if num_hidden_layers <= 3:
            # small depth: static unroll for LLO scheduler visibility
            for l in range(num_hidden_layers):
                x = layer(l, x)
        else:
            # deep MLP: bound live ranges / code size with fori_loop
            x = lax.fori_loop(0, num_hidden_layers, layer, x)

    # fused mean / log_std head: single matmul, clamp only columns [A, 2A)
    # via a (1, Ap2) row mask broadcast over the tile, single lane-dense store.
    y = jnp.dot(x.astype(cdt), w_head_ref[...],
                preferred_element_type=jnp.float32)
    y = y + b_head_ref[...]
    col = lax.broadcasted_iota(jnp.int32, (1, y.shape[1]), 1)
    is_log_std = jnp.logical_and(col >= num_actions, col < 2 * num_actions)
    y = jnp.where(is_log_std, jnp.clip(y, LOG_SIG_MIN, LOG_SIG_MAX), y)
    out_ref[...] = y.astype(out_ref.dtype)


# --------------------------------------------------------------------------
# Parameter init (mirrors the PyTorch module) and packing for the kernel
# --------------------------------------------------------------------------
def _xavier_uniform(key, fan_in, fan_out):
    bound = jnp.sqrt(6.0 / (fan_in + fan_out)).astype(jnp.float32)
    # stored as [in, out] so the kernel computes x @ W
    return jax.random.uniform(key, (fan_in, fan_out), jnp.float32, -bound, bound)


def init_params(key, num_inputs, num_actions, hidden_dim, num_hidden=2):
    # Matches GaussianPolicy: input layer, (num_hidden - 1) hidden layers,
    # mean head, log_std head. Xavier-uniform weights, zero biases.
    n_hidden_layers = num_hidden - 1
    keys = jax.random.split(key, n_hidden_layers + 3)
    params = {
        "w_in": _xavier_uniform(keys[0], num_inputs, hidden_dim),
        "b_in": jnp.zeros((hidden_dim,), jnp.float32),
        "hidden": [
            (_xavier_uniform(keys[3 + h], hidden_dim, hidden_dim),
             jnp.zeros((hidden_dim,), jnp.float32))
            for h in range(n_hidden_layers)
        ],
        "w_mean": _xavier_uniform(keys[1], hidden_dim, num_actions),
        "b_mean": jnp.zeros((num_actions,), jnp.float32),
        "w_log_std": _xavier_uniform(keys[2], hidden_dim, num_actions),
        "b_log_std": jnp.zeros((num_actions,), jnp.float32),
    }
    return params


def pack_params(params, weight_dtype=jnp.float32):
    """One-time packing: pad feature dims to 128 lanes, stack hidden layers,
    fuse the two heads into one weight/bias.  Weights may be stored bf16
    (f32 accumulation in-kernel); biases stay f32."""
    w_in = params["w_in"]
    K, H = w_in.shape
    A = params["w_mean"].shape[1]
    L = len(params["hidden"])
    Hp = _round_up(H, _LANE)
    Ap2 = _round_up(2 * A, _LANE)

    def pad2(w, rows, cols, dtype=jnp.float32):
        out = jnp.zeros((rows, cols), dtype)
        return out.at[: w.shape[0], : w.shape[1]].set(w.astype(dtype))

    w_head = jnp.concatenate([params["w_mean"], params["w_log_std"]], axis=1)
    b_head = jnp.concatenate([params["b_mean"], params["b_log_std"]])[None, :]

    packed = {
        "num_actions": A,
        "num_hidden_layers": L,
        "hidden_padded": Hp,
        "head_padded": Ap2,
        "w_in": pad2(w_in, K, Hp, weight_dtype),
        "b_in": pad2(params["b_in"][None, :], 1, Hp),
        "w_head": pad2(w_head, Hp, Ap2, weight_dtype),
        "b_head": pad2(b_head, 1, Ap2),
    }
    if L > 0:
        packed["w_hid"] = jnp.stack(
            [pad2(w, Hp, Hp, weight_dtype) for w, _ in params["hidden"]])
        packed["b_hid"] = jnp.stack(
            [pad2(b[None, :], 1, Hp) for _, b in params["hidden"]])
    return packed


# --------------------------------------------------------------------------
# Forward wrapper
# --------------------------------------------------------------------------
def _wspec(shape, index_map, mode):
    if mode is None:
        return pl.BlockSpec(shape, index_map)
    return pl.BlockSpec(shape, index_map, pipeline_mode=mode)


def gaussian_policy_forward(state, packed, *, batch_tile=256):
    """state: [B, num_inputs] f32.  packed: output of pack_params."""
    B, K = state.shape
    A = packed["num_actions"]
    L = packed["num_hidden_layers"]
    Hp = packed["hidden_padded"]
    Ap2 = packed["head_padded"]
    w_dtype = packed["w_in"].dtype
    w_itemsize = jnp.dtype(w_dtype).itemsize

    # Balanced batch tiles: pick the tile count first so per-tile padding
    # stays < 8 rows, then round the tile to a sublane multiple.  The 256-row
    # default keeps >= 2 grid steps for B > 256 (v7x megacore split) and a
    # modest per-step activation footprint.
    n_tiles = max(1, _cdiv(B, batch_tile))
    TB = _round_up(_cdiv(B, n_tiles), _SUBLANE)
    Bp = TB * n_tiles
    state_p = state if Bp == B else jnp.pad(state, ((0, Bp - B), (0, 0)))
    grid = (n_tiles,)

    operands = [state_p, packed["w_in"], packed["b_in"]]
    if L > 0:
        operands += [packed["w_hid"], packed["b_hid"]]
    operands += [packed["w_head"], packed["b_head"]]

    out_shape = jax.ShapeDtypeStruct((Bp, Ap2), jnp.float32)
    out_specs = pl.BlockSpec((TB, Ap2), lambda i: (i, 0))

    flops = 2 * Bp * (K * Hp + L * Hp * Hp + Hp * Ap2)
    weight_bytes = (w_itemsize * (K * Hp + L * Hp * Hp + Hp * Ap2)
                    + 4 * (Hp + L * Hp + Ap2))
    io_tile_bytes = 4 * (TB * K + TB * Ap2)          # one state + one out tile
    bytes_accessed = int(weight_bytes + 4 * (Bp * K + Bp * Ap2))

    kernel = functools.partial(_policy_kernel, L, A, w_dtype)

    def build(weight_mode):
        in_specs = [
            pl.BlockSpec((TB, K), lambda i: (i, 0)),          # batch-tiled input
            _wspec((K, Hp), lambda i: (0, 0), weight_mode),   # resident weights
            _wspec((1, Hp), lambda i: (0, 0), weight_mode),
        ]
        if L > 0:
            in_specs += [
                _wspec((L, Hp, Hp), lambda i: (0, 0, 0), weight_mode),
                _wspec((L, 1, Hp), lambda i: (0, 0, 0), weight_mode),
            ]
        in_specs += [
            _wspec((Hp, Ap2), lambda i: (0, 0), weight_mode),
            _wspec((1, Ap2), lambda i: (0, 0), weight_mode),
        ]

        # Explicit VMEM budget: weights x (1 or 2) buffers, double-buffered
        # state/out tiles, plus activation headroom; clamp to sane bounds.
        wbuf = 1 if weight_mode is not None else 2
        vmem_limit = int(1.3 * (wbuf * weight_bytes
                                + 2 * io_tile_bytes
                                + 2 * 4 * TB * Hp))
        vmem_limit = min(max(vmem_limit, 32 << 20), 128 << 20)

        return pl.pallas_call(
            kernel,
            grid=grid,
            in_specs=in_specs,
            out_specs=out_specs,
            out_shape=out_shape,
            compiler_params=pltpu.CompilerParams(
                dimension_semantics=("parallel",),
                vmem_limit_bytes=vmem_limit),
            cost_estimate=pl.CostEstimate(
                flops=flops, transcendentals=0,
                bytes_accessed=bytes_accessed),
        )

    try:
        # Single-buffer the resident weights (constant index_map => one DMA);
        # halves the weight-stack VMEM footprint vs default double-buffering.
        out = jax.block_until_ready(build(pl.Buffered(1))(*operands))
    except Exception:
        # Fallback: default pipelining (correct, just 2x weight VMEM).
        out = build(None)(*operands)

    mean = out[:B, :A]
    log_std = out[:B, A:2 * A]
    return mean, log_std


# --------------------------------------------------------------------------
# Pure-JAX reference (unpadded, un-fused) for correctness checking
# --------------------------------------------------------------------------
def _reference_forward(state, params):
    x = jnp.maximum(state @ params["w_in"] + params["b_in"][None, :], 0.0)
    for w_h, b_h in params["hidden"]:
        x = jnp.maximum(x @ w_h + b_h[None, :], 0.0)
    mean = x @ params["w_mean"] + params["b_mean"][None, :]
    log_std = jnp.clip(x @ params["w_log_std"] + params["b_log_std"][None, :],
                       LOG_SIG_MIN, LOG_SIG_MAX)
    return mean, log_std


if __name__ == "__main__":
    # small shapes: batch=8, num_inputs=16, hidden_dim=32, num_actions=8, num_hidden=2
    B, NUM_INPUTS, HIDDEN, NUM_ACTIONS, NUM_HIDDEN = 8, 16, 32, 8, 2

    key = jax.random.PRNGKey(0)
    k_state, k_params = jax.random.split(key)
    state = jax.random.normal(k_state, (B, NUM_INPUTS), jnp.float32)
    params = init_params(k_params, NUM_INPUTS, NUM_ACTIONS, HIDDEN, NUM_HIDDEN)

    ref_mean, ref_log_std = _reference_forward(state, params)

    # f32 parity path (default)
    packed = pack_params(params)
    mean, log_std = gaussian_policy_forward(state, packed)
    jax.block_until_ready((mean, log_std))
    assert mean.shape == (B, NUM_ACTIONS) and log_std.shape == (B, NUM_ACTIONS)
    assert jnp.allclose(mean, ref_mean, atol=1e-5, rtol=1e-5)
    assert jnp.allclose(log_std, ref_log_std, atol=1e-5, rtol=1e-5)

    # bf16-weight fast path (f32 accumulate) — not bit-exact with PyTorch f32
    packed_bf16 = pack_params(params, weight_dtype=jnp.bfloat16)
    mean_b, log_std_b = gaussian_policy_forward(state, packed_bf16)
    jax.block_until_ready((mean_b, log_std_b))
    assert mean_b.shape == (B, NUM_ACTIONS) and log_std_b.shape == (B, NUM_ACTIONS)
    assert jnp.allclose(mean_b, ref_mean, atol=1e-1, rtol=1e-1)
    assert jnp.allclose(log_std_b, ref_log_std, atol=1e-1, rtol=1e-1)

    # TODO(synk): sample() (rsample + tanh squashing log-prob) is a stochastic
    # method outside forward(); not implemented in the kernel.
    print("KERNEL_OK")
</pallas_src>

<mosaic_0001>
module attributes {stable_mosaic.version = 11 : i64} {
  func.func @_policy_kernel(%arg0: i32, %arg1: memref<8x16xf32, #tpu.memory_space<vmem>>, %arg2: memref<16x128xf32, #tpu.memory_space<vmem>>, %arg3: memref<1x128xf32, #tpu.memory_space<vmem>>, %arg4: memref<1x128x128xf32, #tpu.memory_space<vmem>>, %arg5: memref<1x1x128xf32, #tpu.memory_space<vmem>>, %arg6: memref<128x128xf32, #tpu.memory_space<vmem>>, %arg7: memref<1x128xf32, #tpu.memory_space<vmem>>, %arg8: memref<8x128xf32, #tpu.memory_space<vmem>>) attributes {dimension_semantics = [#tpu.dimension_semantics<parallel>], iteration_bounds = array<i64: 1>, scalar_prefetch = 0 : i64, scratch_operands = 0 : i64, tpu.core_type = #tpu.core_type<tc>, window_params = [{transform_indices = @transform_0, window_bounds = array<i64: 8, 16>}, {pipeline_mode = #tpu.pipeline_mode<synchronous>, transform_indices = @transform_1, window_bounds = array<i64: 16, 128>}, {pipeline_mode = #tpu.pipeline_mode<synchronous>, transform_indices = @transform_2, window_bounds = array<i64: 1, 128>}, {pipeline_mode = #tpu.pipeline_mode<synchronous>, transform_indices = @transform_3, window_bounds = array<i64: 1, 128, 128>}, {pipeline_mode = #tpu.pipeline_mode<synchronous>, transform_indices = @transform_4, window_bounds = array<i64: 1, 1, 128>}, {pipeline_mode = #tpu.pipeline_mode<synchronous>, transform_indices = @transform_5, window_bounds = array<i64: 128, 128>}, {pipeline_mode = #tpu.pipeline_mode<synchronous>, transform_indices = @transform_6, window_bounds = array<i64: 1, 128>}, {transform_indices = @transform_7, window_bounds = array<i64: 8, 128>}]} {
    %c0 = arith.constant 0 : index
    %c0_0 = arith.constant 0 : index
    %0 = vector.load %arg1[%c0, %c0_0] : memref<8x16xf32, #tpu.memory_space<vmem>>, vector<8x16xf32>
    %c0_1 = arith.constant 0 : index
    %c0_2 = arith.constant 0 : index
    %1 = vector.load %arg2[%c0_1, %c0_2] : memref<16x128xf32, #tpu.memory_space<vmem>>, vector<16x128xf32>
    %cst = arith.constant dense<0.000000e+00> : vector<8x128xf32>
    %2 = tpu.matmul %0, %1, %cst {dimension_numbers = #tpu.dot_dimension_numbers<[1], [0], [0], [1], [0, 0, 1, 1], [], []>} : vector<8x16xf32>, vector<16x128xf32>, vector<8x128xf32> -> vector<8x128xf32>
    %c0_3 = arith.constant 0 : index
    %c0_4 = arith.constant 0 : index
    %3 = vector.load %arg3[%c0_3, %c0_4] : memref<1x128xf32, #tpu.memory_space<vmem>>, vector<1x128xf32>
    %4 = vector.broadcast %3 : vector<1x128xf32> to vector<8x128xf32>
    %5 = arith.addf %2, %4 : vector<8x128xf32>
    %cst_5 = arith.constant 0.000000e+00 : f32
    %6 = vector.broadcast %cst_5 : f32 to vector<8x128xf32>
    %7 = arith.maximumf %5, %6 : vector<8x128xf32>
    %c0_6 = arith.constant 0 : index
    %c0_7 = arith.constant 0 : index
    %c0_8 = arith.constant 0 : index
    %8 = vector.load %arg4[%c0_6, %c0_7, %c0_8] : memref<1x128x128xf32, #tpu.memory_space<vmem>>, vector<1x128x128xf32>
    %9 = vector.shape_cast %8 : vector<1x128x128xf32> to vector<128x128xf32>
    %cst_9 = arith.constant dense<0.000000e+00> : vector<8x128xf32>
    %10 = tpu.matmul %7, %9, %cst_9 {dimension_numbers = #tpu.dot_dimension_numbers<[1], [0], [0], [1], [0, 0, 1, 1], [], []>} : vector<8x128xf32>, vector<128x128xf32>, vector<8x128xf32> -> vector<8x128xf32>
    %c0_10 = arith.constant 0 : index
    %c0_11 = arith.constant 0 : index
    %c0_12 = arith.constant 0 : index
    %11 = vector.load %arg5[%c0_10, %c0_11, %c0_12] : memref<1x1x128xf32, #tpu.memory_space<vmem>>, vector<1x1x128xf32>
    %12 = vector.shape_cast %11 : vector<1x1x128xf32> to vector<1x128xf32>
    %13 = vector.broadcast %12 : vector<1x128xf32> to vector<8x128xf32>
    %14 = arith.addf %10, %13 : vector<8x128xf32>
    %cst_13 = arith.constant 0.000000e+00 : f32
    %15 = vector.broadcast %cst_13 : f32 to vector<8x128xf32>
    %16 = arith.maximumf %14, %15 : vector<8x128xf32>
    %c0_14 = arith.constant 0 : index
    %c0_15 = arith.constant 0 : index
    %17 = vector.load %arg6[%c0_14, %c0_15] : memref<128x128xf32, #tpu.memory_space<vmem>>, vector<128x128xf32>
    %cst_16 = arith.constant dense<0.000000e+00> : vector<8x128xf32>
    %18 = tpu.matmul %16, %17, %cst_16 {dimension_numbers = #tpu.dot_dimension_numbers<[1], [0], [0], [1], [0, 0, 1, 1], [], []>} : vector<8x128xf32>, vector<128x128xf32>, vector<8x128xf32> -> vector<8x128xf32>
    %c0_17 = arith.constant 0 : index
    %c0_18 = arith.constant 0 : index
    %19 = vector.load %arg7[%c0_17, %c0_18] : memref<1x128xf32, #tpu.memory_space<vmem>>, vector<1x128xf32>
    %20 = vector.broadcast %19 : vector<1x128xf32> to vector<8x128xf32>
    %21 = arith.addf %18, %20 : vector<8x128xf32>
    %22 = tpu.iota {dimensions = array<i32: 1>} : vector<1x128xi32>
    %c8_i32 = arith.constant 8 : i32
    %23 = vector.broadcast %c8_i32 : i32 to vector<1x128xi32>
    %24 = arith.cmpi sge, %22, %23 : vector<1x128xi32>
    %c16_i32 = arith.constant 16 : i32
    %25 = vector.broadcast %c16_i32 : i32 to vector<1x128xi32>
    %26 = arith.cmpi slt, %22, %25 : vector<1x128xi32>
    %27 = arith.andi %24, %26 : vector<1x128xi1>
    %cst_19 = arith.constant -2.000000e+01 : f32
    %cst_20 = arith.constant 2.000000e+00 : f32
    %28 = vector.broadcast %cst_19 : f32 to vector<8x128xf32>
    %29 = arith.maximumf %28, %21 : vector<8x128xf32>
    %30 = vector.broadcast %cst_20 : f32 to vector<8x128xf32>
    %31 = arith.minimumf %30, %29 : vector<8x128xf32>
    %32 = vector.shape_cast %27 : vector<1x128xi1> to vector<1x128xi1>
    %33 = vector.broadcast %32 : vector<1x128xi1> to vector<8x128xi1>
    %34 = arith.select %33, %31, %21 : vector<8x128xi1>, vector<8x128xf32>
    %c0_21 = arith.constant 0 : index
    %c0_22 = arith.constant 0 : index
    %35 = vector.load %arg8[%c0_21, %c0_22] : memref<8x128xf32, #tpu.memory_space<vmem>>, vector<8x128xf32>
    tpu.vector_store %arg8[%c0_21, %c0_22], %34 {strides = array<i32>} : memref<8x128xf32, #tpu.memory_space<vmem>>, vector<8x128xf32>,
    return
  }
  func.func @transform_0(%arg0: i32) -> (i32, i32) {
    %c0_i32 = arith.constant 0 : i32
    %c0_i32_0 = arith.constant 0 : i32
    return %arg0, %c0_i32 : i32, i32
  }
  func.func @transform_1(%arg0: i32) -> (i32, i32) {
    %c0_i32 = arith.constant 0 : i32
    %c0_i32_0 = arith.constant 0 : i32
    %c0_i32_1 = arith.constant 0 : i32
    return %c0_i32, %c0_i32_0 : i32, i32
  }
  func.func @transform_2(%arg0: i32) -> (i32, i32) {
    %c0_i32 = arith.constant 0 : i32
    %c0_i32_0 = arith.constant 0 : i32
    %c0_i32_1 = arith.constant 0 : i32
    return %c0_i32, %c0_i32_0 : i32, i32
  }
  func.func @transform_3(%arg0: i32) -> (i32, i32, i32) {
    %c0_i32 = arith.constant 0 : i32
    %c0_i32_0 = arith.constant 0 : i32
    %c0_i32_1 = arith.constant 0 : i32
    %c0_i32_2 = arith.constant 0 : i32
    return %c0_i32, %c0_i32_0, %c0_i32_1 : i32, i32, i32
  }
  func.func @transform_4(%arg0: i32) -> (i32, i32, i32) {
    %c0_i32 = arith.constant 0 : i32
    %c0_i32_0 = arith.constant 0 : i32
    %c0_i32_1 = arith.constant 0 : i32
    %c0_i32_2 = arith.constant 0 : i32
    return %c0_i32, %c0_i32_0, %c0_i32_1 : i32, i32, i32
  }
  func.func @transform_5(%arg0: i32) -> (i32, i32) {
    %c0_i32 = arith.constant 0 : i32
    %c0_i32_0 = arith.constant 0 : i32
    %c0_i32_1 = arith.constant 0 : i32
    return %c0_i32, %c0_i32_0 : i32, i32
  }
  func.func @transform_6(%arg0: i32) -> (i32, i32) {
    %c0_i32 = arith.constant 0 : i32
    %c0_i32_0 = arith.constant 0 : i32
    %c0_i32_1 = arith.constant 0 : i32
    return %c0_i32, %c0_i32_0 : i32, i32
  }
  func.func @transform_7(%arg0: i32) -> (i32, i32) {
    %c0_i32 = arith.constant 0 : i32
    %c0_i32_0 = arith.constant 0 : i32
    return %arg0, %c0_i32 : i32, i32
  }
}

module attributes {stable_mosaic.version = 11 : i64} {
  func.func @_policy_kernel(%arg0: i32, %arg1: memref<8x16xf32, #tpu.memory_space<vmem>>, %arg2: memref<16x128xf32, #tpu.memory_space<vmem>>, %arg3: memref<1x128xf32, #tpu.memory_space<vmem>>, %arg4: memref<1x128x128xf32, #tpu.memory_space<vmem>>, %arg5: memref<1x1x128xf32, #tpu.memory_space<vmem>>, %arg6: memref<128x128xf32, #tpu.memory_space<vmem>>, %arg7: memref<1x128xf32, #tpu.memory_space<vmem>>, %arg8: memref<8x128xf32, #tpu.memory_space<vmem>>) attributes {dimension_semantics = [#tpu.dimension_semantics<parallel>], iteration_bounds = array<i64: 1>, scalar_prefetch = 0 : i64, scratch_operands = 0 : i64, tpu.core_type = #tpu.core_type<tc>, window_params = [{transform_indices = @transform_0, window_bounds = array<i64: 8, 16>}, {pipeline_mode = #tpu.pipeline_mode<synchronous>, transform_indices = @transform_1, window_bounds = array<i64: 16, 128>}, {pipeline_mode = #tpu.pipeline_mode<synchronous>, transform_indices = @transform_2, window_bounds = array<i64: 1, 128>}, {pipeline_mode = #tpu.pipeline_mode<synchronous>, transform_indices = @transform_3, window_bounds = array<i64: 1, 128, 128>}, {pipeline_mode = #tpu.pipeline_mode<synchronous>, transform_indices = @transform_4, window_bounds = array<i64: 1, 1, 128>}, {pipeline_mode = #tpu.pipeline_mode<synchronous>, transform_indices = @transform_5, window_bounds = array<i64: 128, 128>}, {pipeline_mode = #tpu.pipeline_mode<synchronous>, transform_indices = @transform_6, window_bounds = array<i64: 1, 128>}, {transform_indices = @transform_7, window_bounds = array<i64: 8, 128>}]} {
    %c0 = arith.constant 0 : index
    %c0_0 = arith.constant 0 : index
    %0 = vector.load %arg1[%c0, %c0_0] : memref<8x16xf32, #tpu.memory_space<vmem>>, vector<8x16xf32>
    %c0_1 = arith.constant 0 : index
    %c0_2 = arith.constant 0 : index
    %1 = vector.load %arg2[%c0_1, %c0_2] : memref<16x128xf32, #tpu.memory_space<vmem>>, vector<16x128xf32>
    %cst = arith.constant dense<0.000000e+00> : vector<8x128xf32>
    %2 = tpu.matmul %0, %1, %cst {dimension_numbers = #tpu.dot_dimension_numbers<[1], [0], [0], [1], [0, 0, 1, 1], [], []>} : vector<8x16xf32>, vector<16x128xf32>, vector<8x128xf32> -> vector<8x128xf32>
    %c0_3 = arith.constant 0 : index
    %c0_4 = arith.constant 0 : index
    %3 = vector.load %arg3[%c0_3, %c0_4] : memref<1x128xf32, #tpu.memory_space<vmem>>, vector<1x128xf32>
    %4 = vector.broadcast %3 : vector<1x128xf32> to vector<8x128xf32>
    %5 = arith.addf %2, %4 : vector<8x128xf32>
    %cst_5 = arith.constant 0.000000e+00 : f32
    %6 = vector.broadcast %cst_5 : f32 to vector<8x128xf32>
    %7 = arith.maximumf %5, %6 : vector<8x128xf32>
    %c0_6 = arith.constant 0 : index
    %c0_7 = arith.constant 0 : index
    %c0_8 = arith.constant 0 : index
    %8 = vector.load %arg4[%c0_6, %c0_7, %c0_8] : memref<1x128x128xf32, #tpu.memory_space<vmem>>, vector<1x128x128xf32>
    %9 = vector.shape_cast %8 : vector<1x128x128xf32> to vector<128x128xf32>
    %cst_9 = arith.constant dense<0.000000e+00> : vector<8x128xf32>
    %10 = tpu.matmul %7, %9, %cst_9 {dimension_numbers = #tpu.dot_dimension_numbers<[1], [0], [0], [1], [0, 0, 1, 1], [], []>} : vector<8x128xf32>, vector<128x128xf32>, vector<8x128xf32> -> vector<8x128xf32>
    %c0_10 = arith.constant 0 : index
    %c0_11 = arith.constant 0 : index
    %c0_12 = arith.constant 0 : index
    %11 = vector.load %arg5[%c0_10, %c0_11, %c0_12] : memref<1x1x128xf32, #tpu.memory_space<vmem>>, vector<1x1x128xf32>
    %12 = vector.shape_cast %11 : vector<1x1x128xf32> to vector<1x128xf32>
    %13 = vector.broadcast %12 : vector<1x128xf32> to vector<8x128xf32>
    %14 = arith.addf %10, %13 : vector<8x128xf32>
    %cst_13 = arith.constant 0.000000e+00 : f32
    %15 = vector.broadcast %cst_13 : f32 to vector<8x128xf32>
    %16 = arith.maximumf %14, %15 : vector<8x128xf32>
    %c0_14 = arith.constant 0 : index
    %c0_15 = arith.constant 0 : index
    %17 = vector.load %arg6[%c0_14, %c0_15] : memref<128x128xf32, #tpu.memory_space<vmem>>, vector<128x128xf32>
    %cst_16 = arith.constant dense<0.000000e+00> : vector<8x128xf32>
    %18 = tpu.matmul %16, %17, %cst_16 {dimension_numbers = #tpu.dot_dimension_numbers<[1], [0], [0], [1], [0, 0, 1, 1], [], []>} : vector<8x128xf32>, vector<128x128xf32>, vector<8x128xf32> -> vector<8x128xf32>
    %c0_17 = arith.constant 0 : index
    %c0_18 = arith.constant 0 : index
    %19 = vector.load %arg7[%c0_17, %c0_18] : memref<1x128xf32, #tpu.memory_space<vmem>>, vector<1x128xf32>
    %20 = vector.broadcast %19 : vector<1x128xf32> to vector<8x128xf32>
    %21 = arith.addf %18, %20 : vector<8x128xf32>
    %22 = tpu.iota {dimensions = array<i32: 1>} : vector<1x128xi32>
    %c8_i32 = arith.constant 8 : i32
    %23 = vector.broadcast %c8_i32 : i32 to vector<1x128xi32>
    %24 = arith.cmpi sge, %22, %23 : vector<1x128xi32>
    %c16_i32 = arith.constant 16 : i32
    %25 = vector.broadcast %c16_i32 : i32 to vector<1x128xi32>
    %26 = arith.cmpi slt, %22, %25 : vector<1x128xi32>
    %27 = arith.andi %24, %26 : vector<1x128xi1>
    %cst_19 = arith.constant -2.000000e+01 : f32
    %cst_20 = arith.constant 2.000000e+00 : f32
    %28 = vector.broadcast %cst_19 : f32 to vector<8x128xf32>
    %29 = arith.maximumf %28, %21 : vector<8x128xf32>
    %30 = vector.broadcast %cst_20 : f32 to vector<8x128xf32>
    %31 = arith.minimumf %30, %29 : vector<8x128xf32>
    %32 = vector.shape_cast %27 : vector<1x128xi1> to vector<1x128xi1>
    %33 = vector.broadcast %32 : vector<1x128xi1> to vector<8x128xi1>
    %34 = arith.select %33, %31, %21 : vector<8x128xi1>, vector<8x128xf32>
    %c0_21 = arith.constant 0 : index
    %c0_22 = arith.constant 0 : index
    %35 = vector.load %arg8[%c0_21, %c0_22] : memref<8x128xf32, #tpu.memory_space<vmem>>, vector<8x128xf32>
    tpu.vector_store %arg8[%c0_21, %c0_22], %34 {strides = array<i32>} : memref<8x128xf32, #tpu.memory_space<vmem>>, vector<8x128xf32>,
    return
  }
  func.func @transform_0(%arg0: i32) -> (i32, i32) {
    %c0_i32 = arith.constant 0 : i32
    %c0_i32_0 = arith.constant 0 : i32
    return %arg0, %c0_i32 : i32, i32
  }
  func.func @transform_1(%arg0: i32) -> (i32, i32) {
    %c0_i32 = arith.constant 0 : i32
    %c0_i32_0 = arith.constant 0 : i32
    %c0_i32_1 = arith.constant 0 : i32
    return %c0_i32, %c0_i32_0 : i32, i32
  }
  func.func @transform_2(%arg0: i32) -> (i32, i32) {
    %c0_i32 = arith.constant 0 : i32
    %c0_i32_0 = arith.constant 0 : i32
    %c0_i32_1 = arith.constant 0 : i32
    return %c0_i32, %c0_i32_0 : i32, i32
  }
  func.func @transform_3(%arg0: i32) -> (i32, i32, i32) {
    %c0_i32 = arith.constant 0 : i32
    %c0_i32_0 = arith.constant 0 : i32
    %c0_i32_1 = arith.constant 0 : i32
    %c0_i32_2 = arith.constant 0 : i32
    return %c0_i32, %c0_i32_0, %c0_i32_1 : i32, i32, i32
  }
  func.func @transform_4(%arg0: i32) -> (i32, i32, i32) {
    %c0_i32 = arith.constant 0 : i32
    %c0_i32_0 = arith.constant 0 : i32
    %c0_i32_1 = arith.constant 0 : i32
    %c0_i32_2 = arith.constant 0 : i32
    return %c0_i32, %c0_i32_0, %c0_i32_1 : i32, i32, i32
  }
  func.func @transform_5(%arg0: i32) -> (i32, i32) {
    %c0_i32 = arith.constant 0 : i32
    %c0_i32_0 = arith.constant 0 : i32
    %c0_i32_1 = arith.constant 0 : i32
    return %c0_i32, %c0_i32_0 : i32, i32
  }
  func.func @transform_6(%arg0: i32) -> (i32, i32) {
    %c0_i32 = arith.constant 0 : i32
    %c0_i32_0 = arith.constant 0 : i32
    %c0_i32_1 = arith.constant 0 : i32
    return %c0_i32, %c0_i32_0 : i32, i32
  }
  func.func @transform_7(%arg0: i32) -> (i32, i32) {
    %c0_i32 = arith.constant 0 : i32
    %c0_i32_0 = arith.constant 0 : i32
    return %arg0, %c0_i32 : i32, i32
  }
}

</mosaic_0001>

<llo_original>
// kernel: tpu_custom_call.1
$region0: #{tpu_custom_call.1}
  #allocation0 [shape = 'u32[]', space=smem, size = 0x4, offset = 0x4, fixed_abs, tag = 'smem constant byte address 0x4 - core index']
  #allocation1 [shape = 'u32[72,128]{1,0:T(1,128)}', space=vmem, size = 0x9000, scoped, tag = 'internal scratch']
  %s0 = inlined_call_operand.hbm [shape: f32[8,16], index: 0, kind: input, shape index: {}]
  %s1 = inlined_call_operand.hbm [shape: f32[16,128], index: 1, kind: input, shape index: {}]
  %s2 = inlined_call_operand.vmem [shape: f32[1,128], index: 2, kind: input, shape index: {}]
  %s3 = inlined_call_operand.hbm [shape: f32[1,128,128], index: 3, kind: input, shape index: {}]
  %s4 = inlined_call_operand.vmem [shape: f32[1,1,128], index: 4, kind: input, shape index: {}]
  %s5 = inlined_call_operand.hbm [shape: f32[128,128], index: 5, kind: input, shape index: {}]
  %s6 = inlined_call_operand.vmem [shape: f32[1,128], index: 6, kind: input, shape index: {}]
  %s7 = inlined_call_operand.hbm [shape: f32[8,128], index: 7, kind: output, shape index: {}]
  %s8 = sld [smem:[#allocation0]]
  $region54: #{tpu_custom_call.1} parent=0
    _
  %s10 = ssub.s32 1, %s8
  %s11 = scalar_select 0, %s10, %s8
  $region1: #{tpu_custom_call.1} parent=0
    #allocation2 [shape = 'u8[4096]{0}', space=vmem, size = 0x1000, scoped, tag = 'input window, operand 0, single buffered']
    #allocation3 [shape = 's32[1]{0}', space=sflag, size = 0x4, scoped, tag = 'scoped memory for tpu_custom_call.1']
    #allocation4 [shape = 's32[1]{0}', space=sflag, size = 0x4, scoped, tag = 'scoped memory for tpu_custom_call.1']
    #allocation5 [shape = 'u8[8192]{0}', space=vmem, size = 0x2000, scoped, tag = 'input window, operand 1, single buffered']
    #allocation6 [shape = 's32[1]{0}', space=sflag, size = 0x4, scoped, tag = 'scoped memory for tpu_custom_call.1']
    #allocation7 [shape = 'u8[65536]{0}', space=vmem, size = 0x10000, scoped, tag = 'input window, operand 3, single buffered']
    #allocation8 [shape = 'u8[65536]{0}', space=vmem, size = 0x10000, scoped, tag = 'input window, operand 5, single buffered']
    #allocation9 [shape = 's32[1]{0}', space=sflag, size = 0x4, scoped, tag = 'scoped memory for tpu_custom_call.1']
    #allocation10 [shape = 'u8[4096]{0}', space=vmem, size = 0x1000, scoped, tag = 'output window, operand 0, single buffered']
    %12 = vsyncpa [#allocation3], 0
    %13 = vsyncpa [#allocation6], 0
    %14 = vsyncpa [#allocation9], 0
    %15 = vsyncpa [#allocation4], 0
    // Predicated region
    $region2: #{tpu_custom_call.1} parent=1 // pred_check
      _
    $region3: #{tpu_custom_call.1} parent=1 // pred_check_branch
      %17 = sbr.rel (0) target = $region5
    $region4: #{tpu_custom_call.1} parent=1 // pred_region
      %19 = vsyncadd [#allocation3], 0
      %s21 = sshll.u32 %s0, 4
      %s22 = int_to_ptr.hbm [resolvable:$true] %s21
      %s23 = sshll.u32 [#allocation2], 4
      %s24 = int_to_ptr.vmem [resolvable:$true] %s23
      %26 = dma.hbm_to_vmem [thread:$0]  %s22, 128, %s24, [#allocation3]
    $region5: #{tpu_custom_call.1} parent=1 // pred_fallthru
      _
    // Predicated region
    $region6: #{tpu_custom_call.1} parent=1 // pred_check
      _
    $region7: #{tpu_custom_call.1} parent=1 // pred_check_branch
      %28 = sbr.rel (0) target = $region9
    $region8: #{tpu_custom_call.1} parent=1 // pred_region
      %30 = vsyncadd [#allocation6], 0
      %s31 = sshll.u32 %s1, 4
      %s32 = int_to_ptr.hbm [resolvable:$true] %s31
      %s33 = sshll.u32 [#allocation5], 4
      %s34 = int_to_ptr.vmem [resolvable:$true] %s33
      %39 = dma.hbm_to_vmem [thread:$0]  %s32, 256, %s34, [#allocation6], 128, 128, 8
    $region9: #{tpu_custom_call.1} parent=1 // pred_fallthru
      _
    // Predicated region
    $region10: #{tpu_custom_call.1} parent=1 // pred_check
      _
    $region11: #{tpu_custom_call.1} parent=1 // pred_check_branch
      %41 = sbr.rel (0) target = $region13
    $region12: #{tpu_custom_call.1} parent=1 // pred_region
      _
    $region13: #{tpu_custom_call.1} parent=1 // pred_fallthru
      _
    // Predicated region
    $region14: #{tpu_custom_call.1} parent=1 // pred_check
      _
    $region15: #{tpu_custom_call.1} parent=1 // pred_check_branch
      %43 = sbr.rel (0) target = $region17
    $region16: #{tpu_custom_call.1} parent=1 // pred_region
      %45 = vsyncadd [#allocation6], 0
      %s46 = sshll.u32 %s3, 4
      %s47 = int_to_ptr.hbm [resolvable:$true] %s46
      %s48 = sshll.u32 [#allocation7], 4
      %s49 = int_to_ptr.vmem [resolvable:$true] %s48
      %54 = dma.hbm_to_vmem [thread:$0]  %s47, 2048, %s49, [#allocation6], 128, 128, 8
    $region17: #{tpu_custom_call.1} parent=1 // pred_fallthru
      _
    // Predicated region
    $region18: #{tpu_custom_call.1} parent=1 // pred_check
      _
    $region19: #{tpu_custom_call.1} parent=1 // pred_check_branch
      %56 = sbr.rel (0) target = $region21
    $region20: #{tpu_custom_call.1} parent=1 // pred_region
      _
    $region21: #{tpu_custom_call.1} parent=1 // pred_fallthru
      _
    // Predicated region
    $region22: #{tpu_custom_call.1} parent=1 // pred_check
      _
    $region23: #{tpu_custom_call.1} parent=1 // pred_check_branch
      %58 = sbr.rel (0) target = $region25
    $region24: #{tpu_custom_call.1} parent=1 // pred_region
      %60 = vsyncadd [#allocation9], 0
      %s61 = sshll.u32 %s5, 4
      %s62 = int_to_ptr.hbm [resolvable:$true] %s61
      %s63 = sshll.u32 [#allocation8], 4
      %s64 = int_to_ptr.vmem [resolvable:$true] %s63
      %69 = dma.hbm_to_vmem [thread:$0]  %s62, 2048, %s64, [#allocation9], 128, 128, 8
    $region25: #{tpu_custom_call.1} parent=1 // pred_fallthru
      _
    // Predicated region
    $region26: #{tpu_custom_call.1} parent=1 // pred_check
      _
    $region27: #{tpu_custom_call.1} parent=1 // pred_check_branch
      %71 = sbr.rel (0) target = $region29
    $region28: #{tpu_custom_call.1} parent=1 // pred_region
      _
    $region29: #{tpu_custom_call.1} parent=1 // pred_fallthru
      _
    // Predicated region
    $region30: #{tpu_custom_call.1} parent=1 // pred_check
      _
    $region31: #{tpu_custom_call.1} parent=1 // pred_check_branch
      %73 = sbr.rel (0) target = $region33
    $region32: #{tpu_custom_call.1} parent=1 // pred_region
      %75 = dma.done [#allocation3], 128
    $region33: #{tpu_custom_call.1} parent=1 // pred_fallthru
      _
    // Predicated region
    $region34: #{tpu_custom_call.1} parent=1 // pred_check
      _
    $region35: #{tpu_custom_call.1} parent=1 // pred_check_branch
      %77 = sbr.rel (0) target = $region37
    $region36: #{tpu_custom_call.1} parent=1 // pred_region
      %79 = dma.done [#allocation6], 256
    $region37: #{tpu_custom_call.1} parent=1 // pred_fallthru
      _
    // Predicated region
    $region38: #{tpu_custom_call.1} parent=1 // pred_check
      _
    $region39: #{tpu_custom_call.1} parent=1 // pred_check_branch
      %81 = sbr.rel (0) target = $region41
    $region40: #{tpu_custom_call.1} parent=1 // pred_region
      %83 = dma.done [#allocation6], 2048
    $region41: #{tpu_custom_call.1} parent=1 // pred_fallthru
      _
    // Predicated region
    $region42: #{tpu_custom_call.1} parent=1 // pred_check
      _
    $region43: #{tpu_custom_call.1} parent=1 // pred_check_branch
      %85 = sbr.rel (0) target = $region45
    $region44: #{tpu_custom_call.1} parent=1 // pred_region
      %87 = dma.done [#allocation9], 2048
    $region45: #{tpu_custom_call.1} parent=1 // pred_fallthru
      _
    %v88 = vld [vmem:[#allocation2] sm:$0xff]
    %v89 = vld [vmem:[#allocation5] sm:$0xff]
    %v90 = vld [vmem:[#allocation5 + $0x8] sm:$0xff]
    %v91 = vld [vmem:[%s2] sm:$0x1]
    %v93 = vperm.slane %v91, 0
    %vm95 = vcmask 130048
    %v97 = vsel %vm95, %v88, 0
    %99 = vmatpush.msra.mxu0 0.0
    %100 = vmatpush.msra.mxu0 0.0
    %101 = vmatpush.msra.mxu0 0.0
    %102 = vmatpush.msra.mxu0 0.0
    %103 = vmatpush.msra.mxu0 0.0
    %104 = vmatpush.msra.mxu0 0.0
    %105 = vmatpush.msra.mxu0 0.0
    %106 = vmatpush.msra.mxu0 0.0
    %107 = vmatpush.msra.mxu0 0.0
    %108 = vmatpush.msra.mxu0 0.0
    %109 = vmatpush.msra.mxu0 0.0
    %110 = vmatpush.msra.mxu0 0.0
    %111 = vmatpush.msra.mxu0 0.0
    %112 = vmatpush.msra.mxu0 0.0
    %113 = vmatpush.msra.mxu0 %v90
    %114 = vmatpush.msra.mxu0 %v89
    %115 = vmatmul.f32.gmra.mxu0 %v97
    %v116 = vpop.f32.mrf.mxu0
    %v117 = vadd.f32 %v93, %v116
    %118 = vdwg.mxu0
    %v119 = vmax.f32 %v117, 0.0
    %v120 = vld [vmem:[#allocation7] sm:$0xff]
    %v121 = vld [vmem:[#allocation7 + $0x8] sm:$0xff]
    %v122 = vld [vmem:[#allocation7 + $0x10] sm:$0xff]
    %v123 = vld [vmem:[#allocation7 + $0x18] sm:$0xff]
    %v124 = vld [vmem:[#allocation7 + $0x20] sm:$0xff]
    %v125 = vld [vmem:[#allocation7 + $0x28] sm:$0xff]
    %v126 = vld [vmem:[#allocation7 + $0x30] sm:$0xff]
    %v127 = vld [vmem:[#allocation7 + $0x38] sm:$0xff]
    %v128 = vld [vmem:[#allocation7 + $0x40] sm:$0xff]
    %v129 = vld [vmem:[#allocation7 + $0x48] sm:$0xff]
    %v130 = vld [vmem:[#allocation7 + $0x50] sm:$0xff]
    %v131 = vld [vmem:[#allocation7 + $0x58] sm:$0xff]
    %v132 = vld [vmem:[#allocation7 + $0x60] sm:$0xff]
    %v133 = vld [vmem:[#allocation7 + $0x68] sm:$0xff]
    %v134 = vld [vmem:[#allocation7 + $0x70] sm:$0xff]
    %v135 = vld [vmem:[#allocation7 + $0x78] sm:$0xff]
    %v136 = vld [vmem:[%s4] sm:$0x1]
    %v138 = vperm.slane %v136, 0
    %140 = vmatpush.msra.mxu0 %v135
    %141 = vmatpush.msra.mxu0 %v134
    %142 = vmatpush.msra.mxu0 %v133
    %143 = vmatpush.msra.mxu0 %v132
    %144 = vmatpush.msra.mxu0 %v131
    %145 = vmatpush.msra.mxu0 %v130
    %146 = vmatpush.msra.mxu0 %v129
    %147 = vmatpush.msra.mxu0 %v128
    %148 = vmatpush.msra.mxu0 %v127
    %149 = vmatpush.msra.mxu0 %v126
    %150 = vmatpush.msra.mxu0 %v125
    %151 = vmatpush.msra.mxu0 %v124
    %152 = vmatpush.msra.mxu0 %v123
    %153 = vmatpush.msra.mxu0 %v122
    %154 = vmatpush.msra.mxu0 %v121
    %155 = vmatpush.msra.mxu0 %v120
    %156 = vmatmul.f32.gmra.mxu0 %v119
    %v157 = vpop.f32.mrf.mxu0
    %v158 = vadd.f32 %v138, %v157
    %159 = vdwg.mxu0
    %v160 = vmax.f32 %v158, 0.0
    %v161 = vld [vmem:[#allocation8] sm:$0xff]
    %v162 = vld [vmem:[#allocation8 + $0x8] sm:$0xff]
    %v163 = vld [vmem:[#allocation8 + $0x10] sm:$0xff]
    %v164 = vld [vmem:[#allocation8 + $0x18] sm:$0xff]
    %v165 = vld [vmem:[#allocation8 + $0x20] sm:$0xff]
    %v166 = vld [vmem:[#allocation8 + $0x28] sm:$0xff]
    %v167 = vld [vmem:[#allocation8 + $0x30] sm:$0xff]
    %v168 = vld [vmem:[#allocation8 + $0x38] sm:$0xff]
    %v169 = vld [vmem:[#allocation8 + $0x40] sm:$0xff]
    %v170 = vld [vmem:[#allocation8 + $0x48] sm:$0xff]
    %v171 = vld [vmem:[#allocation8 + $0x50] sm:$0xff]
    %v172 = vld [vmem:[#allocation8 + $0x58] sm:$0xff]
    %v173 = vld [vmem:[#allocation8 + $0x60] sm:$0xff]
    %v174 = vld [vmem:[#allocation8 + $0x68] sm:$0xff]
    %v175 = vld [vmem:[#allocation8 + $0x70] sm:$0xff]
    %v176 = vld [vmem:[#allocation8 + $0x78] sm:$0xff]
    %v177 = vld [vmem:[%s6] sm:$0x1]
    %v179 = vperm.slane %v177, 0
    %181 = vmatpush.msra.mxu0 %v176
    %182 = vmatpush.msra.mxu0 %v175
    %183 = vmatpush.msra.mxu0 %v174
    %184 = vmatpush.msra.mxu0 %v173
    %185 = vmatpush.msra.mxu0 %v172
    %186 = vmatpush.msra.mxu0 %v171
    %187 = vmatpush.msra.mxu0 %v170
    %188 = vmatpush.msra.mxu0 %v169
    %189 = vmatpush.msra.mxu0 %v168
    %190 = vmatpush.msra.mxu0 %v167
    %191 = vmatpush.msra.mxu0 %v166
    %192 = vmatpush.msra.mxu0 %v165
    %193 = vmatpush.msra.mxu0 %v164
    %194 = vmatpush.msra.mxu0 %v163
    %195 = vmatpush.msra.mxu0 %v162
    %196 = vmatpush.msra.mxu0 %v161
    %197 = vmatmul.f32.gmra.mxu0 %v160
    %v198 = vpop.f32.mrf.mxu0
    %v199 = vadd.f32 %v179, %v198
    %200 = vdwg.mxu0
    %v201 = vlaneseq
    %v202 = vand.u32 %v201, 127
    %vm203 = vcmp.ge.s32.totalorder %v202, 8
    %vm204 = vcmp.lt.s32.totalorder %v202, 16
    %vm205 = vmand %vm203, %vm204
    %v206 = vmax.f32 %v199, -20.0
    %v207 = vmin.f32 %v206, 2.0
    %v208 = vsel %vm205, 1, 0
    %vm209 = vcmp.eq.s32.totalorder %v208, 1
    %v210 = vsel %vm209, %v207, %v199
    %211 = vst [vmem:[#allocation10] sm:$0xff] %v210
    // Predicated region
    $region46: #{tpu_custom_call.1} parent=1 // pred_check
      _
    $region47: #{tpu_custom_call.1} parent=1 // pred_check_branch
      %213 = sbr.rel (0) target = $region49
    $region48: #{tpu_custom_call.1} parent=1 // pred_region
      %215 = vsyncadd [#allocation4], 0
      %s217 = sshll.u32 [#allocation10], 4
      %s218 = int_to_ptr.vmem [resolvable:$true] %s217
      %s219 = sshll.u32 %s7, 4
      %s220 = int_to_ptr.hbm [resolvable:$true] %s219
      %222 = dma.vmem_to_hbm [thread:$0]  %s218, 128, %s220, [#allocation4]
    $region49: #{tpu_custom_call.1} parent=1 // pred_fallthru
      _
    // Predicated region
    $region50: #{tpu_custom_call.1} parent=1 // pred_check
      _
    $region51: #{tpu_custom_call.1} parent=1 // pred_check_branch
      %224 = sbr.rel (0) target = $region53
    $region52: #{tpu_custom_call.1} parent=1 // pred_region
      %226 = dma.done [#allocation4], 128
    $region53: #{tpu_custom_call.1} parent=1 // pred_fallthru
      _
    %227 = vsyncpa [#allocation3], 1
    %228 = vsyncpa [#allocation6], 1
    %229 = vsyncpa [#allocation9], 1
    %230 = vsyncpa [#allocation4], 1

// kernel: tpu_custom_call.1
$region0: #{tpu_custom_call.1}
  #allocation0 [shape = 'u32[]', space=smem, size = 0x4, offset = 0x4, fixed_abs, tag = 'smem constant byte address 0x4 - core index']
  #allocation1 [shape = 'u32[72,128]{1,0:T(1,128)}', space=vmem, size = 0x9000, scoped, tag = 'internal scratch']
  %s0 = inlined_call_operand.hbm [shape: f32[8,16], index: 0, kind: input, shape index: {}]
  %s1 = inlined_call_operand.hbm [shape: f32[16,128], index: 1, kind: input, shape index: {}]
  %s2 = inlined_call_operand.vmem [shape: f32[1,128], index: 2, kind: input, shape index: {}]
  %s3 = inlined_call_operand.hbm [shape: f32[1,128,128], index: 3, kind: input, shape index: {}]
  %s4 = inlined_call_operand.vmem [shape: f32[1,1,128], index: 4, kind: input, shape index: {}]
  %s5 = inlined_call_operand.hbm [shape: f32[128,128], index: 5, kind: input, shape index: {}]
  %s6 = inlined_call_operand.vmem [shape: f32[1,128], index: 6, kind: input, shape index: {}]
  %s7 = inlined_call_operand.hbm [shape: f32[8,128], index: 7, kind: output, shape index: {}]
  %s8 = sld [smem:[#allocation0]]
  $region54: #{tpu_custom_call.1} parent=0
    _
  %s10 = ssub.s32 1, %s8
  %s11 = scalar_select 0, %s10, %s8
  $region1: #{tpu_custom_call.1} parent=0
    #allocation2 [shape = 'u8[4096]{0}', space=vmem, size = 0x1000, scoped, tag = 'input window, operand 0, single buffered']
    #allocation3 [shape = 's32[1]{0}', space=sflag, size = 0x4, scoped, tag = 'scoped memory for tpu_custom_call.1']
    #allocation4 [shape = 's32[1]{0}', space=sflag, size = 0x4, scoped, tag = 'scoped memory for tpu_custom_call.1']
    #allocation5 [shape = 'u8[8192]{0}', space=vmem, size = 0x2000, scoped, tag = 'input window, operand 1, single buffered']
    #allocation6 [shape = 's32[1]{0}', space=sflag, size = 0x4, scoped, tag = 'scoped memory for tpu_custom_call.1']
    #allocation7 [shape = 'u8[65536]{0}', space=vmem, size = 0x10000, scoped, tag = 'input window, operand 3, single buffered']
    #allocation8 [shape = 'u8[65536]{0}', space=vmem, size = 0x10000, scoped, tag = 'input window, operand 5, single buffered']
    #allocation9 [shape = 's32[1]{0}', space=sflag, size = 0x4, scoped, tag = 'scoped memory for tpu_custom_call.1']
    #allocation10 [shape = 'u8[4096]{0}', space=vmem, size = 0x1000, scoped, tag = 'output window, operand 0, single buffered']
    %12 = vsyncpa [#allocation3], 0
    %13 = vsyncpa [#allocation6], 0
    %14 = vsyncpa [#allocation9], 0
    %15 = vsyncpa [#allocation4], 0
    // Predicated region
    $region2: #{tpu_custom_call.1} parent=1 // pred_check
      _
    $region3: #{tpu_custom_call.1} parent=1 // pred_check_branch
      %17 = sbr.rel (0) target = $region5
    $region4: #{tpu_custom_call.1} parent=1 // pred_region
      %19 = vsyncadd [#allocation3], 0
      %s21 = sshll.u32 %s0, 4
      %s22 = int_to_ptr.hbm [resolvable:$true] %s21
      %s23 = sshll.u32 [#allocation2], 4
      %s24 = int_to_ptr.vmem [resolvable:$true] %s23
      %26 = dma.hbm_to_vmem [thread:$0]  %s22, 128, %s24, [#allocation3]
    $region5: #{tpu_custom_call.1} parent=1 // pred_fallthru
      _
    // Predicated region
    $region6: #{tpu_custom_call.1} parent=1 // pred_check
      _
    $region7: #{tpu_custom_call.1} parent=1 // pred_check_branch
      %28 = sbr.rel (0) target = $region9
    $region8: #{tpu_custom_call.1} parent=1 // pred_region
      %30 = vsyncadd [#allocation6], 0
      %s31 = sshll.u32 %s1, 4
      %s32 = int_to_ptr.hbm [resolvable:$true] %s31
      %s33 = sshll.u32 [#allocation5], 4
      %s34 = int_to_ptr.vmem [resolvable:$true] %s33
      %39 = dma.hbm_to_vmem [thread:$0]  %s32, 256, %s34, [#allocation6], 128, 128, 8
    $region9: #{tpu_custom_call.1} parent=1 // pred_fallthru
      _
    // Predicated region
    $region10: #{tpu_custom_call.1} parent=1 // pred_check
      _
    $region11: #{tpu_custom_call.1} parent=1 // pred_check_branch
      %41 = sbr.rel (0) target = $region13
    $region12: #{tpu_custom_call.1} parent=1 // pred_region
      _
    $region13: #{tpu_custom_call.1} parent=1 // pred_fallthru
      _
    // Predicated region
    $region14: #{tpu_custom_call.1} parent=1 // pred_check
      _
    $region15: #{tpu_custom_call.1} parent=1 // pred_check_branch
      %43 = sbr.rel (0) target = $region17
    $region16: #{tpu_custom_call.1} parent=1 // pred_region
      %45 = vsyncadd [#allocation6], 0
      %s46 = sshll.u32 %s3, 4
      %s47 = int_to_ptr.hbm [resolvable:$true] %s46
      %s48 = sshll.u32 [#allocation7], 4
      %s49 = int_to_ptr.vmem [resolvable:$true] %s48
      %54 = dma.hbm_to_vmem [thread:$0]  %s47, 2048, %s49, [#allocation6], 128, 128, 8
    $region17: #{tpu_custom_call.1} parent=1 // pred_fallthru
      _
    // Predicated region
    $region18: #{tpu_custom_call.1} parent=1 // pred_check
      _
    $region19: #{tpu_custom_call.1} parent=1 // pred_check_branch
      %56 = sbr.rel (0) target = $region21
    $region20: #{tpu_custom_call.1} parent=1 // pred_region
      _
    $region21: #{tpu_custom_call.1} parent=1 // pred_fallthru
      _
    // Predicated region
    $region22: #{tpu_custom_call.1} parent=1 // pred_check
      _
    $region23: #{tpu_custom_call.1} parent=1 // pred_check_branch
      %58 = sbr.rel (0) target = $region25
    $region24: #{tpu_custom_call.1} parent=1 // pred_region
      %60 = vsyncadd [#allocation9], 0
      %s61 = sshll.u32 %s5, 4
      %s62 = int_to_ptr.hbm [resolvable:$true] %s61
      %s63 = sshll.u32 [#allocation8], 4
      %s64 = int_to_ptr.vmem [resolvable:$true] %s63
      %69 = dma.hbm_to_vmem [thread:$0]  %s62, 2048, %s64, [#allocation9], 128, 128, 8
    $region25: #{tpu_custom_call.1} parent=1 // pred_fallthru
      _
    // Predicated region
    $region26: #{tpu_custom_call.1} parent=1 // pred_check
      _
    $region27: #{tpu_custom_call.1} parent=1 // pred_check_branch
      %71 = sbr.rel (0) target = $region29
    $region28: #{tpu_custom_call.1} parent=1 // pred_region
      _
    $region29: #{tpu_custom_call.1} parent=1 // pred_fallthru
      _
    // Predicated region
    $region30: #{tpu_custom_call.1} parent=1 // pred_check
      _
    $region31: #{tpu_custom_call.1} parent=1 // pred_check_branch
      %73 = sbr.rel (0) target = $region33
    $region32: #{tpu_custom_call.1} parent=1 // pred_region
      %75 = dma.done [#allocation3], 128
    $region33: #{tpu_custom_call.1} parent=1 // pred_fallthru
      _
    // Predicated region
    $region34: #{tpu_custom_call.1} parent=1 // pred_check
      _
    $region35: #{tpu_custom_call.1} parent=1 // pred_check_branch
      %77 = sbr.rel (0) target = $region37
    $region36: #{tpu_custom_call.1} parent=1 // pred_region
      %79 = dma.done [#allocation6], 256
    $region37: #{tpu_custom_call.1} parent=1 // pred_fallthru
      _
    // Predicated region
    $region38: #{tpu_custom_call.1} parent=1 // pred_check
      _
    $region39: #{tpu_custom_call.1} parent=1 // pred_check_branch
      %81 = sbr.rel (0) target = $region41
    $region40: #{tpu_custom_call.1} parent=1 // pred_region
      %83 = dma.done [#allocation6], 2048
    $region41: #{tpu_custom_call.1} parent=1 // pred_fallthru
      _
    // Predicated region
    $region42: #{tpu_custom_call.1} parent=1 // pred_check
      _
    $region43: #{tpu_custom_call.1} parent=1 // pred_check_branch
      %85 = sbr.rel (0) target = $region45
    $region44: #{tpu_custom_call.1} parent=1 // pred_region
      %87 = dma.done [#allocation9], 2048
    $region45: #{tpu_custom_call.1} parent=1 // pred_fallthru
      _
    %v88 = vld [vmem:[#allocation2] sm:$0xff]
    %v89 = vld [vmem:[#allocation5] sm:$0xff]
    %v90 = vld [vmem:[#allocation5 + $0x8] sm:$0xff]
    %v91 = vld [vmem:[%s2] sm:$0x1]
    %v93 = vperm.slane %v91, 0
    %vm95 = vcmask 130048
    %v97 = vsel %vm95, %v88, 0
    %99 = vmatpush.msra.mxu0 0.0
    %100 = vmatpush.msra.mxu0 0.0
    %101 = vmatpush.msra.mxu0 0.0
    %102 = vmatpush.msra.mxu0 0.0
    %103 = vmatpush.msra.mxu0 0.0
    %104 = vmatpush.msra.mxu0 0.0
    %105 = vmatpush.msra.mxu0 0.0
    %106 = vmatpush.msra.mxu0 0.0
    %107 = vmatpush.msra.mxu0 0.0
    %108 = vmatpush.msra.mxu0 0.0
    %109 = vmatpush.msra.mxu0 0.0
    %110 = vmatpush.msra.mxu0 0.0
    %111 = vmatpush.msra.mxu0 0.0
    %112 = vmatpush.msra.mxu0 0.0
    %113 = vmatpush.msra.mxu0 %v90
    %114 = vmatpush.msra.mxu0 %v89
    %115 = vmatmul.f32.gmra.mxu0 %v97
    %v116 = vpop.f32.mrf.mxu0
    %v117 = vadd.f32 %v93, %v116
    %118 = vdwg.mxu0
    %v119 = vmax.f32 %v117, 0.0
    %v120 = vld [vmem:[#allocation7] sm:$0xff]
    %v121 = vld [vmem:[#allocation7 + $0x8] sm:$0xff]
    %v122 = vld [vmem:[#allocation7 + $0x10] sm:$0xff]
    %v123 = vld [vmem:[#allocation7 + $0x18] sm:$0xff]
    %v124 = vld [vmem:[#allocation7 + $0x20] sm:$0xff]
    %v125 = vld [vmem:[#allocation7 + $0x28] sm:$0xff]
    %v126 = vld [vmem:[#allocation7 + $0x30] sm:$0xff]
    %v127 = vld [vmem:[#allocation7 + $0x38] sm:$0xff]
    %v128 = vld [vmem:[#allocation7 + $0x40] sm:$0xff]
    %v129 = vld [vmem:[#allocation7 + $0x48] sm:$0xff]
    %v130 = vld [vmem:[#allocation7 + $0x50] sm:$0xff]
    %v131 = vld [vmem:[#allocation7 + $0x58] sm:$0xff]
    %v132 = vld [vmem:[#allocation7 + $0x60] sm:$0xff]
    %v133 = vld [vmem:[#allocation7 + $0x68] sm:$0xff]
    %v134 = vld [vmem:[#allocation7 + $0x70] sm:$0xff]
    %v135 = vld [vmem:[#allocation7 + $0x78] sm:$0xff]
    %v136 = vld [vmem:[%s4] sm:$0x1]
    %v138 = vperm.slane %v136, 0
    %140 = vmatpush.msra.mxu0 %v135
    %141 = vmatpush.msra.mxu0 %v134
    %142 = vmatpush.msra.mxu0 %v133
    %143 = vmatpush.msra.mxu0 %v132
    %144 = vmatpush.msra.mxu0 %v131
    %145 = vmatpush.msra.mxu0 %v130
    %146 = vmatpush.msra.mxu0 %v129
    %147 = vmatpush.msra.mxu0 %v128
    %148 = vmatpush.msra.mxu0 %v127
    %149 = vmatpush.msra.mxu0 %v126
    %150 = vmatpush.msra.mxu0 %v125
    %151 = vmatpush.msra.mxu0 %v124
    %152 = vmatpush.msra.mxu0 %v123
    %153 = vmatpush.msra.mxu0 %v122
    %154 = vmatpush.msra.mxu0 %v121
    %155 = vmatpush.msra.mxu0 %v120
    %156 = vmatmul.f32.gmra.mxu0 %v119
    %v157 = vpop.f32.mrf.mxu0
    %v158 = vadd.f32 %v138, %v157
    %159 = vdwg.mxu0
    %v160 = vmax.f32 %v158, 0.0
    %v161 = vld [vmem:[#allocation8] sm:$0xff]
    %v162 = vld [vmem:[#allocation8 + $0x8] sm:$0xff]
    %v163 = vld [vmem:[#allocation8 + $0x10] sm:$0xff]
    %v164 = vld [vmem:[#allocation8 + $0x18] sm:$0xff]
    %v165 = vld [vmem:[#allocation8 + $0x20] sm:$0xff]
    %v166 = vld [vmem:[#allocation8 + $0x28] sm:$0xff]
    %v167 = vld [vmem:[#allocation8 + $0x30] sm:$0xff]
    %v168 = vld [vmem:[#allocation8 + $0x38] sm:$0xff]
    %v169 = vld [vmem:[#allocation8 + $0x40] sm:$0xff]
    %v170 = vld [vmem:[#allocation8 + $0x48] sm:$0xff]
    %v171 = vld [vmem:[#allocation8 + $0x50] sm:$0xff]
    %v172 = vld [vmem:[#allocation8 + $0x58] sm:$0xff]
    %v173 = vld [vmem:[#allocation8 + $0x60] sm:$0xff]
    %v174 = vld [vmem:[#allocation8 + $0x68] sm:$0xff]
    %v175 = vld [vmem:[#allocation8 + $0x70] sm:$0xff]
    %v176 = vld [vmem:[#allocation8 + $0x78] sm:$0xff]
    %v177 = vld [vmem:[%s6] sm:$0x1]
    %v179 = vperm.slane %v177, 0
    %181 = vmatpush.msra.mxu0 %v176
    %182 = vmatpush.msra.mxu0 %v175
    %183 = vmatpush.msra.mxu0 %v174
    %184 = vmatpush.msra.mxu0 %v173
    %185 = vmatpush.msra.mxu0 %v172
    %186 = vmatpush.msra.mxu0 %v171
    %187 = vmatpush.msra.mxu0 %v170
    %188 = vmatpush.msra.mxu0 %v169
    %189 = vmatpush.msra.mxu0 %v168
    %190 = vmatpush.msra.mxu0 %v167
    %191 = vmatpush.msra.mxu0 %v166
    %192 = vmatpush.msra.mxu0 %v165
    %193 = vmatpush.msra.mxu0 %v164
    %194 = vmatpush.msra.mxu0 %v163
    %195 = vmatpush.msra.mxu0 %v162
    %196 = vmatpush.msra.mxu0 %v161
    %197 = vmatmul.f32.gmra.mxu0 %v160
    %v198 = vpop.f32.mrf.mxu0
    %v199 = vadd.f32 %v179, %v198
    %200 = vdwg.mxu0
    %v201 = vlaneseq
    %v202 = vand.u32 %v201, 127
    %vm203 = vcmp.ge.s32.totalorder %v202, 8
    %vm204 = vcmp.lt.s32.totalorder %v202, 16
    %vm205 = vmand %vm203, %vm204
    %v206 = vmax.f32 %v199, -20.0
    %v207 = vmin.f32 %v206, 2.0
    %v208 = vsel %vm205, 1, 0
    %vm209 = vcmp.eq.s32.totalorder %v208, 1
    %v210 = vsel %vm209, %v207, %v199
    %211 = vst [vmem:[#allocation10] sm:$0xff] %v210
    // Predicated region
    $region46: #{tpu_custom_call.1} parent=1 // pred_check
      _
    $region47: #{tpu_custom_call.1} parent=1 // pred_check_branch
      %213 = sbr.rel (0) target = $region49
    $region48: #{tpu_custom_call.1} parent=1 // pred_region
      %215 = vsyncadd [#allocation4], 0
      %s217 = sshll.u32 [#allocation10], 4
      %s218 = int_to_ptr.vmem [resolvable:$true] %s217
      %s219 = sshll.u32 %s7, 4
      %s220 = int_to_ptr.hbm [resolvable:$true] %s219
      %222 = dma.vmem_to_hbm [thread:$0]  %s218, 128, %s220, [#allocation4]
    $region49: #{tpu_custom_call.1} parent=1 // pred_fallthru
      _
    // Predicated region
    $region50: #{tpu_custom_call.1} parent=1 // pred_check
      _
    $region51: #{tpu_custom_call.1} parent=1 // pred_check_branch
      %224 = sbr.rel (0) target = $region53
    $region52: #{tpu_custom_call.1} parent=1 // pred_region
      %226 = dma.done [#allocation4], 128
    $region53: #{tpu_custom_call.1} parent=1 // pred_fallthru
      _
    %227 = vsyncpa [#allocation3], 1
    %228 = vsyncpa [#allocation6], 1
    %229 = vsyncpa [#allocation9], 1
    %230 = vsyncpa [#allocation4], 1

</llo_original>
